<compile_context>
chip_gen: v5e
topology: v5e:2x2
jax: 0.10.0
libtpu: 0.0.40
codegen_flags: <defaults>
</compile_context>

<pallas_src>
import functools
import math

import jax
import jax.numpy as jnp
import numpy as np
from jax.experimental import pallas as pl
from jax.experimental.pallas import tpu as pltpu

_BLOCK_BYTE_TARGET = 4 * 1024 * 1024   # ~4 MiB / block -> ~16 MiB of buffers
_VMEM_LIMIT_BYTES = 32 * 1024 * 1024   # comfortable on v5e / v6e / v7x


def _copy_kernel(x_ref, o_ref):
    # Identity copy of one (tile_r, lane) tile; lane dim is a multiple of 128,
    # so stores are full-width unmasked vst.
    o_ref[...] = x_ref[...]


def _pick_lane_width(total: int, out_features: int) -> int:
    """Lane-dense slab width, decoupled from out_features."""
    if total % 128 == 0:
        for lane in (2048, 1024, 512, 256, 128):
            if total % lane == 0:
                return lane
    # Fallback (total not a multiple of 128): keep out_features as the minor
    # dim.  Stores may be masked partial vst but remain correct.
    return out_features


def _pick_row_tile(rows: int, cols: int, itemsize: int) -> int:
    """Largest legal row tile whose in+out double buffers fit the VMEM budget."""
    # Sublane granularity: 8 rows for 32-bit, 16 for 16-bit, 32 for 8-bit.
    sub = 8 * max(1, 4 // max(1, itemsize))
    if rows <= sub:
        return rows                        # full-extent block is always legal
    row_bytes = max(1, cols * itemsize)
    # Byte budget: 4 * block (in + out, double-buffered) well under the limit.
    budget_rows = max(sub, (_BLOCK_BYTE_TARGET // row_bytes) // sub * sub)
    # Keep at least 2 grid steps so v7x's second TensorCore gets work.
    half_rows = max(sub, pl.cdiv(pl.cdiv(rows, 2), sub) * sub)
    tile = min(budget_rows, half_rows, (rows // sub) * sub)
    return max(tile, sub)


def flatten(x, out_features: int, *, alias: bool = False):
    """Pallas implementation of torch Flatten: x.view(-1, out_features)."""
    total = math.prod(x.shape)
    assert total % out_features == 0, (x.shape, out_features)
    out_rows = total // out_features

    # Lane-dense slab decoupled from out_features (row-major reshape == torch
    # .view element order; layout plumbing only, free under jit).
    lane = _pick_lane_width(total, out_features)
    rows = total // lane
    x2 = x.reshape(rows, lane)

    tile_r = _pick_row_tile(rows, lane, x.dtype.itemsize)
    grid = (pl.cdiv(rows, tile_r),)

    out2 = pl.pallas_call(
        _copy_kernel,
        out_shape=jax.ShapeDtypeStruct((rows, lane), x.dtype),
        grid=grid,
        in_specs=[pl.BlockSpec((tile_r, lane), lambda i: (i, 0))],
        out_specs=pl.BlockSpec((tile_r, lane), lambda i: (i, 0)),
        # Zero-extra-allocation path: output buffer is the (donated) input.
        input_output_aliases={0: 0} if alias else {},
        compiler_params=pltpu.CompilerParams(
            dimension_semantics=("parallel",),
            vmem_limit_bytes=_VMEM_LIMIT_BYTES,
        ),
    )(x2)

    # Back to the Flatten output shape (layout plumbing, free under jit).
    return out2.reshape(out_rows, out_features)


# Safe default: fresh output buffer (caller keeps x).
flatten_jit = jax.jit(functools.partial(flatten, alias=False), static_argnums=1)
# Zero-extra-allocation path: caller donates x; output aliases the input buffer.
flatten_inplace_jit = jax.jit(
    functools.partial(flatten, alias=True), static_argnums=1, donate_argnums=0)


if __name__ == "__main__":
    B, C, H, W = 2, 4, 16, 16
    out_features = C * H * W          # 1024 -> output (2, 1024)

    key = jax.random.PRNGKey(0)
    x = jax.random.normal(key, (B, C, H, W), jnp.float32)

    # Reference: torch x.view(-1, out_features) == row-major reshape.  Taken on
    # host BEFORE the donating call below invalidates x's device buffer.
    ref = np.asarray(jax.device_get(x)).reshape(-1, out_features)

    # Safe path (fresh output buffer).
    out = jax.block_until_ready(flatten_jit(x, out_features))
    assert out.shape == (B, out_features), out.shape
    assert np.array_equal(np.asarray(out), ref)

    # In-place path (x donated and aliased to the output).
    out2 = jax.block_until_ready(flatten_inplace_jit(x, out_features))
    assert out2.shape == (B, out_features), out2.shape
    assert np.array_equal(np.asarray(out2), ref)
    # NOTE: x's device buffer was donated above; x must not be used past here.

    print("KERNEL_OK")
</pallas_src>

<mosaic_0001>
module attributes {stable_mosaic.version = 11 : i64} {
  func.func @_copy_kernel(%arg0: i32, %arg1: memref<1x2048xf32, #tpu.memory_space<vmem>>, %arg2: memref<1x2048xf32, #tpu.memory_space<vmem>>) attributes {dimension_semantics = [#tpu.dimension_semantics<parallel>], iteration_bounds = array<i64: 1>, scalar_prefetch = 0 : i64, scratch_operands = 0 : i64, tpu.core_type = #tpu.core_type<tc>, window_params = [{transform_indices = @transform_0, window_bounds = array<i64: 1, 2048>}, {transform_indices = @transform_1, window_bounds = array<i64: 1, 2048>}]} {
    %c0 = arith.constant 0 : index
    %c0_0 = arith.constant 0 : index
    %0 = vector.load %arg1[%c0, %c0_0] : memref<1x2048xf32, #tpu.memory_space<vmem>>, vector<1x2048xf32>
    %c0_1 = arith.constant 0 : index
    %c0_2 = arith.constant 0 : index
    %1 = vector.load %arg2[%c0_1, %c0_2] : memref<1x2048xf32, #tpu.memory_space<vmem>>, vector<1x2048xf32>
    tpu.vector_store %arg2[%c0_1, %c0_2], %0 {strides = array<i32>} : memref<1x2048xf32, #tpu.memory_space<vmem>>, vector<1x2048xf32>,
    return
  }
  func.func @transform_0(%arg0: i32) -> (i32, i32) {
    %c0_i32 = arith.constant 0 : i32
    %c0_i32_0 = arith.constant 0 : i32
    return %arg0, %c0_i32 : i32, i32
  }
  func.func @transform_1(%arg0: i32) -> (i32, i32) {
    %c0_i32 = arith.constant 0 : i32
    %c0_i32_0 = arith.constant 0 : i32
    return %arg0, %c0_i32 : i32, i32
  }
}

</mosaic_0001>

<llo_original>
// kernel: flatten.1
$region0: #{flatten.1}
  #allocation0 [shape = 'u32[]', space=smem, size = 0x4, offset = 0x4, fixed_abs, tag = 'smem constant byte address 0x4 - core index']
  #allocation1 [shape = 'u32[72,128]{1,0:T(1,128)}', space=vmem, size = 0x9000, scoped, tag = 'internal scratch']
  %s0 = inlined_call_operand.vmem [shape: f32[1,2048], index: 0, kind: input, shape index: {}]
  %s1 = inlined_call_operand.vmem [shape: f32[1,2048], index: 1, kind: output, shape index: {}]
  %s2 = sld [smem:[#allocation0]]
  $region14: #{flatten.1} parent=0
    _
  %s4 = ssub.s32 1, %s2
  %s5 = scalar_select 0, %s4, %s2
  // Predicated region
  $region2: #{flatten.1} parent=0 // pred_check
    _
  $region3: #{flatten.1} parent=0 // pred_check_branch
    %7 = sbr.rel (0) target = $region5
  $region4: #{flatten.1} parent=0 // pred_region
    _
  $region5: #{flatten.1} parent=0 // pred_fallthru
    _
  %v8 = vld [vmem:[%s0] sm:$0xff]
  %v9 = vld [vmem:[%s0 + $0x8] sm:$0xff]
  %10 = vst [vmem:[%s1] sm:$0xff] %v8
  %11 = vst [vmem:[%s1 + $0x8] sm:$0xff] %v9
  // Predicated region
  $region6: #{flatten.1} parent=0 // pred_check
    _
  $region7: #{flatten.1} parent=0 // pred_check_branch
    %13 = sbr.rel (0) target = $region9
  $region8: #{flatten.1} parent=0 // pred_region
    _
  $region9: #{flatten.1} parent=0 // pred_fallthru
    _
  // Predicated region
  $region10: #{flatten.1} parent=0 // pred_check
    _
  $region11: #{flatten.1} parent=0 // pred_check_branch
    %15 = sbr.rel (0) target = $region13
  $region12: #{flatten.1} parent=0 // pred_region
    _
  $region13: #{flatten.1} parent=0 // pred_fallthru
    _

</llo_original>
